<compile_context>
chip_gen: v6e
topology: v6e:2x2x1
jax: 0.10.0
libtpu: 0.0.40
codegen_flags: <defaults>
</compile_context>

<pallas_src>
import jax
import jax.numpy as jnp
from jax.experimental import pallas as pl
from jax.experimental.pallas import tpu as pltpu

C, H, W = 1024, 7, 7
HW = H * W
# Lane-dense packing: C*H*W = 50176 = 392 * 128 (contiguous reshape, metadata-only).
ROWS, LANES = 392, 128
assert ROWS * LANES == C * HW

MAX_BATCH_BLOCK = 56  # safe on v7x's 64 MiB VMEM even if info query misreports


def mask_kernel(x_ref, mask_ref, o_ref):
    # x_ref:    (B_blk, R_blk, LANES) block of the current batch slab
    # mask_ref: (R_blk, LANES) -- constant block index along batch -> VMEM-resident
    # o_ref:    (B_blk, R_blk, LANES)
    o_ref[...] = (x_ref[...] * mask_ref[...]).astype(o_ref.dtype)


def _tpu_topology():
    """Best-effort (physical VMEM bytes, #TensorCores/chip) with safe fallbacks."""
    vmem_bytes = 64 * 1024 * 1024   # smallest across v5e/v6e/v7x -> conservative
    num_tc = 1                      # conservative: never split work that isn't there
    try:
        info = pltpu.get_tpu_info()
        vmem_bytes = int(getattr(info, "vmem_capacity_bytes", vmem_bytes)) or vmem_bytes
        for attr in ("num_cores", "cores_per_chip", "tensorcores_per_chip",
                     "num_tensorcores", "core_count"):
            val = getattr(info, attr, None)
            if val:
                num_tc = int(val)
                break
    except Exception:
        pass
    if num_tc == 1:
        try:
            kind = jax.devices()[0].device_kind.lower()
            if "7x" in kind or "v7" in kind:   # v7x: 2 TensorCores per chip
                num_tc = 2
        except Exception:
            pass
    return vmem_bytes, max(1, min(num_tc, 2))


def _tiling(n, itemsize):
    """Pick (batch block, row block, vmem limit, grid) for the current chip."""
    vmem_phys, num_tc = _tpu_topology()
    # Scoped-VMEM limit: ~3/4 of physical (48 MiB on v7x, 96 MiB on v5e/v6e).
    vmem_limit = int(max(32 * 1024 * 1024, min(vmem_phys * 3 // 4, 96 * 1024 * 1024)))

    slab = ROWS * LANES * itemsize                 # one batch element, one buffer
    mask_bytes = 2 * ROWS * LANES * itemsize       # double-buffered resident mask
    budget = vmem_limit - mask_bytes - 2 * 1024 * 1024   # headroom for internal scratch
    # x + out, each double-buffered -> 4 slabs per batch element in flight.
    b_cap = int(max(1, min(budget // (4 * slab), MAX_BATCH_BLOCK)))

    b_blk = max(1, min(n, b_cap))
    if num_tc > 1 and n >= num_tc:
        # Keep >= one batch block per TensorCore so the "parallel" axis shards.
        b_blk = max(1, min(b_blk, pl.cdiv(n, num_tc)))

    r_blk = ROWS
    if num_tc > 1 and n < num_tc:
        # Too few batch elements to shard on the batch axis: split rows instead.
        # Row block is a multiple of 32 sublanes (safe for sub-32-bit dtypes),
        # last dim stays the full 128 lanes.
        r_blk = min(ROWS, max(32, (pl.cdiv(ROWS, num_tc) + 31) // 32 * 32))

    grid = (pl.cdiv(n, b_blk), pl.cdiv(ROWS, r_blk))
    return b_blk, r_blk, vmem_limit, grid


def mask_layer(x, mask):
    """x: (N, C, H, W), mask: (C, H, W) -> (N, C, H, W); same semantics as x * mask."""
    n = x.shape[0]
    out_dtype = jnp.result_type(x.dtype, mask.dtype)

    # Contiguous, metadata-only reshapes into the lane-dense layout.
    x_flat = x.reshape(n, ROWS, LANES)
    mask_flat = mask.reshape(ROWS, LANES)

    x_bytes = jnp.dtype(x.dtype).itemsize
    m_bytes = jnp.dtype(mask.dtype).itemsize
    o_bytes = jnp.dtype(out_dtype).itemsize
    b_blk, r_blk, vmem_limit, grid = _tiling(n, max(x_bytes, m_bytes, o_bytes))

    cost = pl.CostEstimate(
        flops=n * C * HW,
        transcendentals=0,
        bytes_accessed=n * C * HW * (x_bytes + o_bytes) + C * HW * m_bytes,
    )

    out_flat = pl.pallas_call(
        mask_kernel,
        out_shape=jax.ShapeDtypeStruct((n, ROWS, LANES), out_dtype),
        grid_spec=pltpu.PrefetchScalarGridSpec(
            num_scalar_prefetch=0,
            grid=grid,
            in_specs=[
                pl.BlockSpec((b_blk, r_blk, LANES), lambda i, r: (i, r, 0)),
                # Constant block index along the batch axis -> mask stays VMEM-resident.
                pl.BlockSpec((r_blk, LANES), lambda i, r: (r, 0)),
            ],
            out_specs=pl.BlockSpec((b_blk, r_blk, LANES), lambda i, r: (i, r, 0)),
        ),
        compiler_params=pltpu.CompilerParams(
            # Independent axes; lets Mosaic shard across v7x's two TensorCores.
            dimension_semantics=("parallel", "parallel"),
            vmem_limit_bytes=vmem_limit,
        ),
        cost_estimate=cost,
    )(x_flat, mask_flat)

    return out_flat.reshape(n, C, H, W)


if __name__ == "__main__":
    key = jax.random.PRNGKey(0)
    k_mask, k_x = jax.random.split(key)

    # Deterministic parameter init mirroring torch.rand(1024, 7, 7): uniform [0, 1).
    mask = jax.random.uniform(k_mask, (C, H, W), dtype=jnp.float32)

    batch = 2
    x = jax.random.normal(k_x, (batch, C, H, W), dtype=jnp.float32)

    out = mask_layer(x, mask)
    out = jax.block_until_ready(out)

    # Reference check against plain JAX broadcasting (same semantics as PyTorch).
    ref = x * mask[None]
    assert out.shape == x.shape and out.dtype == ref.dtype
    assert jnp.allclose(out, ref, atol=1e-6, rtol=1e-6)

    print("KERNEL_OK")
</pallas_src>

<mosaic_0001>
module attributes {stable_mosaic.version = 11 : i64} {
  func.func @mask_kernel(%arg0: i32, %arg1: i32, %arg2: memref<2x392x128xf32, #tpu.memory_space<vmem>>, %arg3: memref<392x128xf32, #tpu.memory_space<vmem>>, %arg4: memref<2x392x128xf32, #tpu.memory_space<vmem>>) attributes {dimension_semantics = [#tpu.dimension_semantics<parallel>, #tpu.dimension_semantics<parallel>], iteration_bounds = array<i64: 1, 1>, scalar_prefetch = 0 : i64, scratch_operands = 0 : i64, tpu.core_type = #tpu.core_type<tc>, window_params = [{transform_indices = @transform_0, window_bounds = array<i64: 2, 392, 128>}, {transform_indices = @transform_1, window_bounds = array<i64: 392, 128>}, {transform_indices = @transform_2, window_bounds = array<i64: 2, 392, 128>}]} {
    %c0 = arith.constant 0 : index
    %c0_0 = arith.constant 0 : index
    %c0_1 = arith.constant 0 : index
    %0 = vector.load %arg2[%c0, %c0_0, %c0_1] : memref<2x392x128xf32, #tpu.memory_space<vmem>>, vector<2x392x128xf32>
    %c0_2 = arith.constant 0 : index
    %c0_3 = arith.constant 0 : index
    %1 = vector.load %arg3[%c0_2, %c0_3] : memref<392x128xf32, #tpu.memory_space<vmem>>, vector<392x128xf32>
    %2 = vector.shape_cast %1 : vector<392x128xf32> to vector<1x392x128xf32>
    %3 = vector.broadcast %2 : vector<1x392x128xf32> to vector<2x392x128xf32>
    %4 = arith.mulf %0, %3 : vector<2x392x128xf32>
    %c0_4 = arith.constant 0 : index
    %c0_5 = arith.constant 0 : index
    %c0_6 = arith.constant 0 : index
    %5 = vector.load %arg4[%c0_4, %c0_5, %c0_6] : memref<2x392x128xf32, #tpu.memory_space<vmem>>, vector<2x392x128xf32>
    tpu.vector_store %arg4[%c0_4, %c0_5, %c0_6], %4 {strides = array<i32>} : memref<2x392x128xf32, #tpu.memory_space<vmem>>, vector<2x392x128xf32>,
    return
  }
  func.func @transform_0(%arg0: i32, %arg1: i32) -> (i32, i32, i32) {
    %c0_i32 = arith.constant 0 : i32
    %c0_i32_0 = arith.constant 0 : i32
    return %arg0, %arg1, %c0_i32 : i32, i32, i32
  }
  func.func @transform_1(%arg0: i32, %arg1: i32) -> (i32, i32) {
    %c0_i32 = arith.constant 0 : i32
    %c0_i32_0 = arith.constant 0 : i32
    return %arg1, %c0_i32 : i32, i32
  }
  func.func @transform_2(%arg0: i32, %arg1: i32) -> (i32, i32, i32) {
    %c0_i32 = arith.constant 0 : i32
    %c0_i32_0 = arith.constant 0 : i32
    return %arg0, %arg1, %c0_i32 : i32, i32, i32
  }
}

</mosaic_0001>

<llo_original>
// kernel: tpu_custom_call.1
$region0: #{tpu_custom_call.1}
  #allocation0 [shape = 'u32[]', space=smem, size = 0x4, offset = 0x4, fixed_abs, tag = 'smem constant byte address 0x4 - core index']
  #allocation1 [shape = 'u32[144,128]{1,0:T(1,128)}', space=vmem, size = 0x12000, scoped, tag = 'internal scratch']
  %s0 = inlined_call_operand.hbm [shape: f32[2,392,128], index: 0, kind: input, shape index: {}]
  %s1 = inlined_call_operand.hbm [shape: f32[392,128], index: 1, kind: input, shape index: {}]
  %s2 = inlined_call_operand.hbm [shape: f32[2,392,128], index: 2, kind: output, shape index: {}]
  %s3 = sld [smem:[#allocation0]]
  $region26: #{tpu_custom_call.1} parent=0
    _
  %s5 = ssub.s32 1, %s3
  %s6 = scalar_select 0, %s5, %s3
  $region1: #{tpu_custom_call.1} parent=0
    #allocation2 [shape = 'u8[401408]{0}', space=vmem, size = 0x62000, scoped, tag = 'input window, operand 0, single buffered']
    #allocation3 [shape = 's32[1]{0}', space=sflag, size = 0x4, scoped, tag = 'scoped memory for tpu_custom_call.1']
    #allocation4 [shape = 's32[1]{0}', space=sflag, size = 0x4, scoped, tag = 'scoped memory for tpu_custom_call.1']
    #allocation5 [shape = 'u8[200704]{0}', space=vmem, size = 0x31000, scoped, tag = 'input window, operand 1, single buffered']
    #allocation6 [shape = 's32[1]{0}', space=sflag, size = 0x4, scoped, tag = 'scoped memory for tpu_custom_call.1']
    #allocation7 [shape = 'u8[401408]{0}', space=vmem, size = 0x62000, scoped, tag = 'output window, operand 0, single buffered']
    %7 = vsyncpa [#allocation3], 0
    %8 = vsyncpa [#allocation6], 0
    %9 = vsyncpa [#allocation4], 0
    // Predicated region
    $region2: #{tpu_custom_call.1} parent=1 // pred_check
      _
    $region3: #{tpu_custom_call.1} parent=1 // pred_check_branch
      %11 = sbr.rel (0) target = $region5
    $region4: #{tpu_custom_call.1} parent=1 // pred_region
      %s13 = ssub.s32 12544, 12544
      %14 = vsyncadd [#allocation3], %s13
      %s15 = sshll.u32 [#allocation2], 4
      %s16 = int_to_ptr.vmem [resolvable:$true] %s15
      %21 = dma.hbm_to_vmem [thread:$0]  %s0, 12544, %s16, [#allocation3], 128, 128, 8
    $region5: #{tpu_custom_call.1} parent=1 // pred_fallthru
      _
    // Predicated region
    $region6: #{tpu_custom_call.1} parent=1 // pred_check
      _
    $region7: #{tpu_custom_call.1} parent=1 // pred_check_branch
      %23 = sbr.rel (0) target = $region9
    $region8: #{tpu_custom_call.1} parent=1 // pred_region
      %s25 = ssub.s32 6272, 6272
      %26 = vsyncadd [#allocation6], %s25
      %s27 = sshll.u32 [#allocation5], 4
      %s28 = int_to_ptr.vmem [resolvable:$true] %s27
      %33 = dma.hbm_to_vmem [thread:$0]  %s1, 6272, %s28, [#allocation6], 128, 128, 8
    $region9: #{tpu_custom_call.1} parent=1 // pred_fallthru
      _
    // Predicated region
    $region10: #{tpu_custom_call.1} parent=1 // pred_check
      _
    $region11: #{tpu_custom_call.1} parent=1 // pred_check_branch
      %35 = sbr.rel (0) target = $region13
    $region12: #{tpu_custom_call.1} parent=1 // pred_region
      %36 = dma.done [#allocation3], 12544
    $region13: #{tpu_custom_call.1} parent=1 // pred_fallthru
      _
    // Predicated region
    $region14: #{tpu_custom_call.1} parent=1 // pred_check
      _
    $region15: #{tpu_custom_call.1} parent=1 // pred_check_branch
      %38 = sbr.rel (0) target = $region17
    $region16: #{tpu_custom_call.1} parent=1 // pred_region
      %39 = dma.done [#allocation6], 6272
    $region17: #{tpu_custom_call.1} parent=1 // pred_fallthru
      _
    %v40 = vld [vmem:[#allocation2] sm:$0xff]
    %v41 = vld [vmem:[#allocation2 + $0x8] sm:$0xff]
    %v42 = vld [vmem:[#allocation2 + $0x10] sm:$0xff]
    %v43 = vld [vmem:[#allocation2 + $0x18] sm:$0xff]
    %v44 = vld [vmem:[#allocation2 + $0x20] sm:$0xff]
    %v45 = vld [vmem:[#allocation2 + $0x28] sm:$0xff]
    %v46 = vld [vmem:[#allocation2 + $0x30] sm:$0xff]
    %v47 = vld [vmem:[#allocation2 + $0x38] sm:$0xff]
    %v48 = vld [vmem:[#allocation2 + $0x40] sm:$0xff]
    %v49 = vld [vmem:[#allocation2 + $0x48] sm:$0xff]
    %v50 = vld [vmem:[#allocation2 + $0x50] sm:$0xff]
    %v51 = vld [vmem:[#allocation2 + $0x58] sm:$0xff]
    %v52 = vld [vmem:[#allocation2 + $0x60] sm:$0xff]
    %v53 = vld [vmem:[#allocation2 + $0x68] sm:$0xff]
    %v54 = vld [vmem:[#allocation2 + $0x70] sm:$0xff]
    %v55 = vld [vmem:[#allocation2 + $0x78] sm:$0xff]
    %v56 = vld [vmem:[#allocation2 + $0x80] sm:$0xff]
    %v57 = vld [vmem:[#allocation2 + $0x88] sm:$0xff]
    %v58 = vld [vmem:[#allocation2 + $0x90] sm:$0xff]
    %v59 = vld [vmem:[#allocation2 + $0x98] sm:$0xff]
    %v60 = vld [vmem:[#allocation2 + $0xa0] sm:$0xff]
    %v61 = vld [vmem:[#allocation2 + $0xa8] sm:$0xff]
    %v62 = vld [vmem:[#allocation2 + $0xb0] sm:$0xff]
    %v63 = vld [vmem:[#allocation2 + $0xb8] sm:$0xff]
    %v64 = vld [vmem:[#allocation2 + $0xc0] sm:$0xff]
    %v65 = vld [vmem:[#allocation2 + $0xc8] sm:$0xff]
    %v66 = vld [vmem:[#allocation2 + $0xd0] sm:$0xff]
    %v67 = vld [vmem:[#allocation2 + $0xd8] sm:$0xff]
    %v68 = vld [vmem:[#allocation2 + $0xe0] sm:$0xff]
    %v69 = vld [vmem:[#allocation2 + $0xe8] sm:$0xff]
    %v70 = vld [vmem:[#allocation2 + $0xf0] sm:$0xff]
    %v71 = vld [vmem:[#allocation2 + $0xf8] sm:$0xff]
    %v72 = vld [vmem:[#allocation2 + $0x100] sm:$0xff]
    %v73 = vld [vmem:[#allocation2 + $0x108] sm:$0xff]
    %v74 = vld [vmem:[#allocation2 + $0x110] sm:$0xff]
    %v75 = vld [vmem:[#allocation2 + $0x118] sm:$0xff]
    %v76 = vld [vmem:[#allocation2 + $0x120] sm:$0xff]
    %v77 = vld [vmem:[#allocation2 + $0x128] sm:$0xff]
    %v78 = vld [vmem:[#allocation2 + $0x130] sm:$0xff]
    %v79 = vld [vmem:[#allocation2 + $0x138] sm:$0xff]
    %v80 = vld [vmem:[#allocation2 + $0x140] sm:$0xff]
    %v81 = vld [vmem:[#allocation2 + $0x148] sm:$0xff]
    %v82 = vld [vmem:[#allocation2 + $0x150] sm:$0xff]
    %v83 = vld [vmem:[#allocation2 + $0x158] sm:$0xff]
    %v84 = vld [vmem:[#allocation2 + $0x160] sm:$0xff]
    %v85 = vld [vmem:[#allocation2 + $0x168] sm:$0xff]
    %v86 = vld [vmem:[#allocation2 + $0x170] sm:$0xff]
    %v87 = vld [vmem:[#allocation2 + $0x178] sm:$0xff]
    %v88 = vld [vmem:[#allocation2 + $0x180] sm:$0xff]
    %v89 = vld [vmem:[#allocation2 + $0x188] sm:$0xff]
    %v90 = vld [vmem:[#allocation2 + $0x190] sm:$0xff]
    %v91 = vld [vmem:[#allocation2 + $0x198] sm:$0xff]
    %v92 = vld [vmem:[#allocation2 + $0x1a0] sm:$0xff]
    %v93 = vld [vmem:[#allocation2 + $0x1a8] sm:$0xff]
    %v94 = vld [vmem:[#allocation2 + $0x1b0] sm:$0xff]
    %v95 = vld [vmem:[#allocation2 + $0x1b8] sm:$0xff]
    %v96 = vld [vmem:[#allocation2 + $0x1c0] sm:$0xff]
    %v97 = vld [vmem:[#allocation2 + $0x1c8] sm:$0xff]
    %v98 = vld [vmem:[#allocation2 + $0x1d0] sm:$0xff]
    %v99 = vld [vmem:[#allocation2 + $0x1d8] sm:$0xff]
    %v100 = vld [vmem:[#allocation2 + $0x1e0] sm:$0xff]
    %v101 = vld [vmem:[#allocation2 + $0x1e8] sm:$0xff]
    %v102 = vld [vmem:[#allocation2 + $0x1f0] sm:$0xff]
    %v103 = vld [vmem:[#allocation2 + $0x1f8] sm:$0xff]
    %v104 = vld [vmem:[#allocation2 + $0x200] sm:$0xff]
    %v105 = vld [vmem:[#allocation2 + $0x208] sm:$0xff]
    %v106 = vld [vmem:[#allocation2 + $0x210] sm:$0xff]
    %v107 = vld [vmem:[#allocation2 + $0x218] sm:$0xff]
    %v108 = vld [vmem:[#allocation2 + $0x220] sm:$0xff]
    %v109 = vld [vmem:[#allocation2 + $0x228] sm:$0xff]
    %v110 = vld [vmem:[#allocation2 + $0x230] sm:$0xff]
    %v111 = vld [vmem:[#allocation2 + $0x238] sm:$0xff]
    %v112 = vld [vmem:[#allocation2 + $0x240] sm:$0xff]
    %v113 = vld [vmem:[#allocation2 + $0x248] sm:$0xff]
    %v114 = vld [vmem:[#allocation2 + $0x250] sm:$0xff]
    %v115 = vld [vmem:[#allocation2 + $0x258] sm:$0xff]
    %v116 = vld [vmem:[#allocation2 + $0x260] sm:$0xff]
    %v117 = vld [vmem:[#allocation2 + $0x268] sm:$0xff]
    %v118 = vld [vmem:[#allocation2 + $0x270] sm:$0xff]
    %v119 = vld [vmem:[#allocation2 + $0x278] sm:$0xff]
    %v120 = vld [vmem:[#allocation2 + $0x280] sm:$0xff]
    %v121 = vld [vmem:[#allocation2 + $0x288] sm:$0xff]
    %v122 = vld [vmem:[#allocation2 + $0x290] sm:$0xff]
    %v123 = vld [vmem:[#allocation2 + $0x298] sm:$0xff]
    %v124 = vld [vmem:[#allocation2 + $0x2a0] sm:$0xff]
    %v125 = vld [vmem:[#allocation2 + $0x2a8] sm:$0xff]
    %v126 = vld [vmem:[#allocation2 + $0x2b0] sm:$0xff]
    %v127 = vld [vmem:[#allocation2 + $0x2b8] sm:$0xff]
    %v128 = vld [vmem:[#allocation2 + $0x2c0] sm:$0xff]
    %v129 = vld [vmem:[#allocation2 + $0x2c8] sm:$0xff]
    %v130 = vld [vmem:[#allocation2 + $0x2d0] sm:$0xff]
    %v131 = vld [vmem:[#allocation2 + $0x2d8] sm:$0xff]
    %v132 = vld [vmem:[#allocation2 + $0x2e0] sm:$0xff]
    %v133 = vld [vmem:[#allocation2 + $0x2e8] sm:$0xff]
    %v134 = vld [vmem:[#allocation2 + $0x2f0] sm:$0xff]
    %v135 = vld [vmem:[#allocation2 + $0x2f8] sm:$0xff]
    %v136 = vld [vmem:[#allocation2 + $0x300] sm:$0xff]
    %v137 = vld [vmem:[#allocation2 + $0x308] sm:$0xff]
    %v138 = vld [vmem:[#allocation5] sm:$0xff]
    %v139 = vld [vmem:[#allocation5 + $0x8] sm:$0xff]
    %v140 = vld [vmem:[#allocation5 + $0x10] sm:$0xff]
    %v141 = vld [vmem:[#allocation5 + $0x18] sm:$0xff]
    %v142 = vld [vmem:[#allocation5 + $0x20] sm:$0xff]
    %v143 = vld [vmem:[#allocation5 + $0x28] sm:$0xff]
    %v144 = vld [vmem:[#allocation5 + $0x30] sm:$0xff]
    %v145 = vld [vmem:[#allocation5 + $0x38] sm:$0xff]
    %v146 = vld [vmem:[#allocation5 + $0x40] sm:$0xff]
    %v147 = vld [vmem:[#allocation5 + $0x48] sm:$0xff]
    %v148 = vld [vmem:[#allocation5 + $0x50] sm:$0xff]
    %v149 = vld [vmem:[#allocation5 + $0x58] sm:$0xff]
    %v150 = vld [vmem:[#allocation5 + $0x60] sm:$0xff]
    %v151 = vld [vmem:[#allocation5 + $0x68] sm:$0xff]
    %v152 = vld [vmem:[#allocation5 + $0x70] sm:$0xff]
    %v153 = vld [vmem:[#allocation5 + $0x78] sm:$0xff]
    %v154 = vld [vmem:[#allocation5 + $0x80] sm:$0xff]
    %v155 = vld [vmem:[#allocation5 + $0x88] sm:$0xff]
    %v156 = vld [vmem:[#allocation5 + $0x90] sm:$0xff]
    %v157 = vld [vmem:[#allocation5 + $0x98] sm:$0xff]
    %v158 = vld [vmem:[#allocation5 + $0xa0] sm:$0xff]
    %v159 = vld [vmem:[#allocation5 + $0xa8] sm:$0xff]
    %v160 = vld [vmem:[#allocation5 + $0xb0] sm:$0xff]
    %v161 = vld [vmem:[#allocation5 + $0xb8] sm:$0xff]
    %v162 = vld [vmem:[#allocation5 + $0xc0] sm:$0xff]
    %v163 = vld [vmem:[#allocation5 + $0xc8] sm:$0xff]
    %v164 = vld [vmem:[#allocation5 + $0xd0] sm:$0xff]
    %v165 = vld [vmem:[#allocation5 + $0xd8] sm:$0xff]
    %v166 = vld [vmem:[#allocation5 + $0xe0] sm:$0xff]
    %v167 = vld [vmem:[#allocation5 + $0xe8] sm:$0xff]
    %v168 = vld [vmem:[#allocation5 + $0xf0] sm:$0xff]
    %v169 = vld [vmem:[#allocation5 + $0xf8] sm:$0xff]
    %v170 = vld [vmem:[#allocation5 + $0x100] sm:$0xff]
    %v171 = vld [vmem:[#allocation5 + $0x108] sm:$0xff]
    %v172 = vld [vmem:[#allocation5 + $0x110] sm:$0xff]
    %v173 = vld [vmem:[#allocation5 + $0x118] sm:$0xff]
    %v174 = vld [vmem:[#allocation5 + $0x120] sm:$0xff]
    %v175 = vld [vmem:[#allocation5 + $0x128] sm:$0xff]
    %v176 = vld [vmem:[#allocation5 + $0x130] sm:$0xff]
    %v177 = vld [vmem:[#allocation5 + $0x138] sm:$0xff]
    %v178 = vld [vmem:[#allocation5 + $0x140] sm:$0xff]
    %v179 = vld [vmem:[#allocation5 + $0x148] sm:$0xff]
    %v180 = vld [vmem:[#allocation5 + $0x150] sm:$0xff]
    %v181 = vld [vmem:[#allocation5 + $0x158] sm:$0xff]
    %v182 = vld [vmem:[#allocation5 + $0x160] sm:$0xff]
    %v183 = vld [vmem:[#allocation5 + $0x168] sm:$0xff]
    %v184 = vld [vmem:[#allocation5 + $0x170] sm:$0xff]
    %v185 = vld [vmem:[#allocation5 + $0x178] sm:$0xff]
    %v186 = vld [vmem:[#allocation5 + $0x180] sm:$0xff]
    %v187 = vmul.f32 %v40, %v138
    %v188 = vmul.f32 %v41, %v139
    %v189 = vmul.f32 %v42, %v140
    %v190 = vmul.f32 %v43, %v141
    %v191 = vmul.f32 %v44, %v142
    %v192 = vmul.f32 %v45, %v143
    %v193 = vmul.f32 %v46, %v144
    %v194 = vmul.f32 %v47, %v145
    %v195 = vmul.f32 %v48, %v146
    %v196 = vmul.f32 %v49, %v147
    %v197 = vmul.f32 %v50, %v148
    %v198 = vmul.f32 %v51, %v149
    %v199 = vmul.f32 %v52, %v150
    %v200 = vmul.f32 %v53, %v151
    %v201 = vmul.f32 %v54, %v152
    %v202 = vmul.f32 %v55, %v153
    %v203 = vmul.f32 %v56, %v154
    %v204 = vmul.f32 %v57, %v155
    %v205 = vmul.f32 %v58, %v156
    %v206 = vmul.f32 %v59, %v157
    %v207 = vmul.f32 %v60, %v158
    %v208 = vmul.f32 %v61, %v159
    %v209 = vmul.f32 %v62, %v160
    %v210 = vmul.f32 %v63, %v161
    %v211 = vmul.f32 %v64, %v162
    %v212 = vmul.f32 %v65, %v163
    %v213 = vmul.f32 %v66, %v164
    %v214 = vmul.f32 %v67, %v165
    %v215 = vmul.f32 %v68, %v166
    %v216 = vmul.f32 %v69, %v167
    %v217 = vmul.f32 %v70, %v168
    %v218 = vmul.f32 %v71, %v169
    %v219 = vmul.f32 %v72, %v170
    %v220 = vmul.f32 %v73, %v171
    %v221 = vmul.f32 %v74, %v172
    %v222 = vmul.f32 %v75, %v173
    %v223 = vmul.f32 %v76, %v174
    %v224 = vmul.f32 %v77, %v175
    %v225 = vmul.f32 %v78, %v176
    %v226 = vmul.f32 %v79, %v177
    %v227 = vmul.f32 %v80, %v178
    %v228 = vmul.f32 %v81, %v179
    %v229 = vmul.f32 %v82, %v180
    %v230 = vmul.f32 %v83, %v181
    %v231 = vmul.f32 %v84, %v182
    %v232 = vmul.f32 %v85, %v183
    %v233 = vmul.f32 %v86, %v184
    %v234 = vmul.f32 %v87, %v185
    %v235 = vmul.f32 %v88, %v186
    %v236 = vmul.f32 %v89, %v138
    %v237 = vmul.f32 %v90, %v139
    %v238 = vmul.f32 %v91, %v140
    %v239 = vmul.f32 %v92, %v141
    %v240 = vmul.f32 %v93, %v142
    %v241 = vmul.f32 %v94, %v143
    %v242 = vmul.f32 %v95, %v144
    %v243 = vmul.f32 %v96, %v145
    %v244 = vmul.f32 %v97, %v146
    %v245 = vmul.f32 %v98, %v147
    %v246 = vmul.f32 %v99, %v148
    %v247 = vmul.f32 %v100, %v149
    %v248 = vmul.f32 %v101, %v150
    %v249 = vmul.f32 %v102, %v151
    %v250 = vmul.f32 %v103, %v152
    %v251 = vmul.f32 %v104, %v153
    %v252 = vmul.f32 %v105, %v154
    %v253 = vmul.f32 %v106, %v155
    %v254 = vmul.f32 %v107, %v156
    %v255 = vmul.f32 %v108, %v157
    %v256 = vmul.f32 %v109, %v158
    %v257 = vmul.f32 %v110, %v159
    %v258 = vmul.f32 %v111, %v160
    %v259 = vmul.f32 %v112, %v161
    %v260 = vmul.f32 %v113, %v162
    %v261 = vmul.f32 %v114, %v163
    %v262 = vmul.f32 %v115, %v164
    %v263 = vmul.f32 %v116, %v165
    %v264 = vmul.f32 %v117, %v166
    %v265 = vmul.f32 %v118, %v167
    %v266 = vmul.f32 %v119, %v168
    %v267 = vmul.f32 %v120, %v169
    %v268 = vmul.f32 %v121, %v170
    %v269 = vmul.f32 %v122, %v171
    %v270 = vmul.f32 %v123, %v172
    %v271 = vmul.f32 %v124, %v173
    %v272 = vmul.f32 %v125, %v174
    %v273 = vmul.f32 %v126, %v175
    %v274 = vmul.f32 %v127, %v176
    %v275 = vmul.f32 %v128, %v177
    %v276 = vmul.f32 %v129, %v178
    %v277 = vmul.f32 %v130, %v179
    %v278 = vmul.f32 %v131, %v180
    %v279 = vmul.f32 %v132, %v181
    %v280 = vmul.f32 %v133, %v182
    %v281 = vmul.f32 %v134, %v183
    %v282 = vmul.f32 %v135, %v184
    %v283 = vmul.f32 %v136, %v185
    %v284 = vmul.f32 %v137, %v186
    %285 = vst [vmem:[#allocation7] sm:$0xff] %v187
    %286 = vst [vmem:[#allocation7 + $0x8] sm:$0xff] %v188
    %287 = vst [vmem:[#allocation7 + $0x10] sm:$0xff] %v189
    %288 = vst [vmem:[#allocation7 + $0x18] sm:$0xff] %v190
    %289 = vst [vmem:[#allocation7 + $0x20] sm:$0xff] %v191
    %290 = vst [vmem:[#allocation7 + $0x28] sm:$0xff] %v192
    %291 = vst [vmem:[#allocation7 + $0x30] sm:$0xff] %v193
    %292 = vst [vmem:[#allocation7 + $0x38] sm:$0xff] %v194
    %293 = vst [vmem:[#allocation7 + $0x40] sm:$0xff] %v195
    %294 = vst [vmem:[#allocation7 + $0x48] sm:$0xff] %v196
    %295 = vst [vmem:[#allocation7 + $0x50] sm:$0xff] %v197
    %296 = vst [vmem:[#allocation7 + $0x58] sm:$0xff] %v198
    %297 = vst [vmem:[#allocation7 + $0x60] sm:$0xff] %v199
    %298 = vst [vmem:[#allocation7 + $0x68] sm:$0xff] %v200
    %299 = vst [vmem:[#allocation7 + $0x70] sm:$0xff] %v201
    %300 = vst [vmem:[#allocation7 + $0x78] sm:$0xff] %v202
    %301 = vst [vmem:[#allocation7 + $0x80] sm:$0xff] %v203
    %302 = vst [vmem:[#allocation7 + $0x88] sm:$0xff] %v204
    %303 = vst [vmem:[#allocation7 + $0x90] sm:$0xff] %v205
    %304 = vst [vmem:[#allocation7 + $0x98] sm:$0xff] %v206
    %305 = vst [vmem:[#allocation7 + $0xa0] sm:$0xff] %v207
    %306 = vst [vmem:[#allocation7 + $0xa8] sm:$0xff] %v208
    %307 = vst [vmem:[#allocation7 + $0xb0] sm:$0xff] %v209
    %308 = vst [vmem:[#allocation7 + $0xb8] sm:$0xff] %v210
    %309 = vst [vmem:[#allocation7 + $0xc0] sm:$0xff] %v211
    %310 = vst [vmem:[#allocation7 + $0xc8] sm:$0xff] %v212
    %311 = vst [vmem:[#allocation7 + $0xd0] sm:$0xff] %v213
    %312 = vst [vmem:[#allocation7 + $0xd8] sm:$0xff] %v214
    %313 = vst [vmem:[#allocation7 + $0xe0] sm:$0xff] %v215
    %314 = vst [vmem:[#allocation7 + $0xe8] sm:$0xff] %v216
    %315 = vst [vmem:[#allocation7 + $0xf0] sm:$0xff] %v217
    %316 = vst [vmem:[#allocation7 + $0xf8] sm:$0xff] %v218
    %317 = vst [vmem:[#allocation7 + $0x100] sm:$0xff] %v219
    %318 = vst [vmem:[#allocation7 + $0x108] sm:$0xff] %v220
    %319 = vst [vmem:[#allocation7 + $0x110] sm:$0xff] %v221
    %320 = vst [vmem:[#allocation7 + $0x118] sm:$0xff] %v222
    %321 = vst [vmem:[#allocation7 + $0x120] sm:$0xff] %v223
    %322 = vst [vmem:[#allocation7 + $0x128] sm:$0xff] %v224
    %323 = vst [vmem:[#allocation7 + $0x130] sm:$0xff] %v225
    %324 = vst [vmem:[#allocation7 + $0x138] sm:$0xff] %v226
    %325 = vst [vmem:[#allocation7 + $0x140] sm:$0xff] %v227
    %326 = vst [vmem:[#allocation7 + $0x148] sm:$0xff] %v228
    %327 = vst [vmem:[#allocation7 + $0x150] sm:$0xff] %v229
    %328 = vst [vmem:[#allocation7 + $0x158] sm:$0xff] %v230
    %329 = vst [vmem:[#allocation7 + $0x160] sm:$0xff] %v231
    %330 = vst [vmem:[#allocation7 + $0x168] sm:$0xff] %v232
    %331 = vst [vmem:[#allocation7 + $0x170] sm:$0xff] %v233
    %332 = vst [vmem:[#allocation7 + $0x178] sm:$0xff] %v234
    %333 = vst [vmem:[#allocation7 + $0x180] sm:$0xff] %v235
    %334 = vst [vmem:[#allocation7 + $0x188] sm:$0xff] %v236
    %335 = vst [vmem:[#allocation7 + $0x190] sm:$0xff] %v237
    %336 = vst [vmem:[#allocation7 + $0x198] sm:$0xff] %v238
    %337 = vst [vmem:[#allocation7 + $0x1a0] sm:$0xff] %v239
    %338 = vst [vmem:[#allocation7 + $0x1a8] sm:$0xff] %v240
    %339 = vst [vmem:[#allocation7 + $0x1b0] sm:$0xff] %v241
    %340 = vst [vmem:[#allocation7 + $0x1b8] sm:$0xff] %v242
    %341 = vst [vmem:[#allocation7 + $0x1c0] sm:$0xff] %v243
    %342 = vst [vmem:[#allocation7 + $0x1c8] sm:$0xff] %v244
    %343 = vst [vmem:[#allocation7 + $0x1d0] sm:$0xff] %v245
    %344 = vst [vmem:[#allocation7 + $0x1d8] sm:$0xff] %v246
    %345 = vst [vmem:[#allocation7 + $0x1e0] sm:$0xff] %v247
    %346 = vst [vmem:[#allocation7 + $0x1e8] sm:$0xff] %v248
    %347 = vst [vmem:[#allocation7 + $0x1f0] sm:$0xff] %v249
    %348 = vst [vmem:[#allocation7 + $0x1f8] sm:$0xff] %v250
    %349 = vst [vmem:[#allocation7 + $0x200] sm:$0xff] %v251
    %350 = vst [vmem:[#allocation7 + $0x208] sm:$0xff] %v252
    %351 = vst [vmem:[#allocation7 + $0x210] sm:$0xff] %v253
    %352 = vst [vmem:[#allocation7 + $0x218] sm:$0xff] %v254
    %353 = vst [vmem:[#allocation7 + $0x220] sm:$0xff] %v255
    %354 = vst [vmem:[#allocation7 + $0x228] sm:$0xff] %v256
    %355 = vst [vmem:[#allocation7 + $0x230] sm:$0xff] %v257
    %356 = vst [vmem:[#allocation7 + $0x238] sm:$0xff] %v258
    %357 = vst [vmem:[#allocation7 + $0x240] sm:$0xff] %v259
    %358 = vst [vmem:[#allocation7 + $0x248] sm:$0xff] %v260
    %359 = vst [vmem:[#allocation7 + $0x250] sm:$0xff] %v261
    %360 = vst [vmem:[#allocation7 + $0x258] sm:$0xff] %v262
    %361 = vst [vmem:[#allocation7 + $0x260] sm:$0xff] %v263
    %362 = vst [vmem:[#allocation7 + $0x268] sm:$0xff] %v264
    %363 = vst [vmem:[#allocation7 + $0x270] sm:$0xff] %v265
    %364 = vst [vmem:[#allocation7 + $0x278] sm:$0xff] %v266
    %365 = vst [vmem:[#allocation7 + $0x280] sm:$0xff] %v267
    %366 = vst [vmem:[#allocation7 + $0x288] sm:$0xff] %v268
    %367 = vst [vmem:[#allocation7 + $0x290] sm:$0xff] %v269
    %368 = vst [vmem:[#allocation7 + $0x298] sm:$0xff] %v270
    %369 = vst [vmem:[#allocation7 + $0x2a0] sm:$0xff] %v271
    %370 = vst [vmem:[#allocation7 + $0x2a8] sm:$0xff] %v272
    %371 = vst [vmem:[#allocation7 + $0x2b0] sm:$0xff] %v273
    %372 = vst [vmem:[#allocation7 + $0x2b8] sm:$0xff] %v274
    %373 = vst [vmem:[#allocation7 + $0x2c0] sm:$0xff] %v275
    %374 = vst [vmem:[#allocation7 + $0x2c8] sm:$0xff] %v276
    %375 = vst [vmem:[#allocation7 + $0x2d0] sm:$0xff] %v277
    %376 = vst [vmem:[#allocation7 + $0x2d8] sm:$0xff] %v278
    %377 = vst [vmem:[#allocation7 + $0x2e0] sm:$0xff] %v279
    %378 = vst [vmem:[#allocation7 + $0x2e8] sm:$0xff] %v280
    %379 = vst [vmem:[#allocation7 + $0x2f0] sm:$0xff] %v281
    %380 = vst [vmem:[#allocation7 + $0x2f8] sm:$0xff] %v282
    %381 = vst [vmem:[#allocation7 + $0x300] sm:$0xff] %v283
    %382 = vst [vmem:[#allocation7 + $0x308] sm:$0xff] %v284
    // Predicated region
    $region18: #{tpu_custom_call.1} parent=1 // pred_check
      _
    $region19: #{tpu_custom_call.1} parent=1 // pred_check_branch
      %384 = sbr.rel (0) target = $region21
    $region20: #{tpu_custom_call.1} parent=1 // pred_region
      %s386 = ssub.s32 12544, 12544
      %387 = vsyncadd [#allocation4], %s386
      %s388 = sshll.u32 [#allocation7], 4
      %s389 = int_to_ptr.vmem [resolvable:$true] %s388
      %394 = dma.vmem_to_hbm [thread:$0]  %s389, 12544, %s2, [#allocation4], 128, 128, 8
    $region21: #{tpu_custom_call.1} parent=1 // pred_fallthru
      _
    // Predicated region
    $region22: #{tpu_custom_call.1} parent=1 // pred_check
      _
    $region23: #{tpu_custom_call.1} parent=1 // pred_check_branch
      %396 = sbr.rel (0) target = $region25
    $region24: #{tpu_custom_call.1} parent=1 // pred_region
      %397 = dma.done [#allocation4], 12544
    $region25: #{tpu_custom_call.1} parent=1 // pred_fallthru
      _
    %398 = vsyncpa [#allocation3], 1
    %399 = vsyncpa [#allocation6], 1
    %400 = vsyncpa [#allocation4], 1

</llo_original>
